<compile_context>
chip_gen: v5e
topology: v5e:2x2
jax: 0.10.0
libtpu: 0.0.40
codegen_flags: <defaults>
</compile_context>

<pallas_src>
import jax
import jax.numpy as jnp
from jax.experimental import pallas as pl
from jax.experimental.pallas import tpu as pltpu


# ---------------------------------------------------------------------------
# Shape helper mirroring pyromancy's Shape(None, *shape) placeholder logic.
# ---------------------------------------------------------------------------
class NodeShape:
    """Node shape with a placeholder (None) leading batch dimension."""

    def __init__(self, *shape):
        # placeholder 0th dim is always added (batch)
        self._shape = (None,) + tuple(shape)

    @property
    def shape(self):
        return self._shape[1:]

    @property
    def bshape(self):
        return tuple(1 if s is None else s for s in self._shape[1:])

    def compat(self, *value_shape):
        if len(value_shape) != len(self._shape):
            return False
        for want, got in zip(self._shape, value_shape):
            if want is not None and want != got:
                return False
        return True


# ---------------------------------------------------------------------------
# Pallas kernel: whole-array HBM -> HBM DMA copy (value <- prediction).
# Both refs live in pl.ANY (HBM); the DMA engine moves the bytes directly,
# no VMEM transit, no grid, no per-step pipeline overhead.
# ---------------------------------------------------------------------------
def _dma_copy_kernel(x_hbm, o_hbm, sem):
    cp = pltpu.make_async_copy(x_hbm, o_hbm, sem)
    cp.start()
    cp.wait()


def _pallas_copy(x):
    """Materialize a distinct copy of `x` via a single HBM->HBM DMA."""
    if x.size == 0:
        return x
    return pl.pallas_call(
        _dma_copy_kernel,
        out_shape=jax.ShapeDtypeStruct(x.shape, x.dtype),
        in_specs=[pl.BlockSpec(memory_space=pl.ANY)],
        out_specs=pl.BlockSpec(memory_space=pl.ANY),
        scratch_shapes=[pltpu.SemaphoreType.DMA(())],
    )(x)


# ---------------------------------------------------------------------------
# PredictiveNode implemented with JAX + Pallas.
# ---------------------------------------------------------------------------
class PredictiveNodeJAX:
    """JAX/Pallas mirror of pyromancy.nodes.base.PredictiveNode.

    Attributes:
        value: current value of the node (starts empty, like nn.Parameter(empty(0))).

    Args:
        *shape: base node shape (a placeholder batch dim is prepended).
        materialize_copy: if True, `init` produces a physically distinct buffer
            via the Pallas HBM->HBM DMA kernel; if False (default, fastest),
            `init` aliases the input, which is semantically equivalent under
            JAX immutability.
    """

    def __init__(self, *shape, materialize_copy=False):
        self._shape = NodeShape(*shape)
        self.value = jnp.empty((0,), dtype=jnp.float32)
        self.training = True
        self.materialize_copy = materialize_copy

    # ---- state management (matches reset / init) --------------------------
    def reset(self):
        self.value = jnp.empty((0,), dtype=self.value.dtype)

    def init(self, value):
        if not self._shape.compat(*value.shape):
            raise ValueError(
                f"shape of `value` {tuple(value.shape)} is incompatible with "
                f"node shape {self._shape._shape}"
            )
        if self.materialize_copy:
            self.value = _pallas_copy(value)
        else:
            # NOTE: aliasing == torch's value.copy_(inputs) under JAX
            # immutability and costs zero HBM traffic. This assumes callers do
            # not donate/overwrite the input buffer via jit donation; set
            # materialize_copy=True if that guarantee is needed.
            self.value = value
        return self.value

    # error() / energy() are abstract in PredictiveNode.
    # TODO(synk): abstract methods `error` and `energy` are implemented only by
    # concrete subclasses (e.g. Gaussian nodes), so they are not provided here.

    # ---- forward (the op being translated) ---------------------------------
    def forward(self, inputs):
        if self.training:
            return self.init(inputs)
        else:
            return inputs

    __call__ = forward


# ---------------------------------------------------------------------------
# Demo / smoke test
# ---------------------------------------------------------------------------
if __name__ == "__main__":
    key = jax.random.PRNGKey(0)
    B, C, H, W = 2, 4, 16, 16          # x: [2, 4, 16, 16] in NCHW
    x = jax.random.normal(key, (B, C, H, W), dtype=jnp.float32)

    # 1) Materializing node: exercises the Pallas HBM->HBM DMA copy kernel.
    node_copy = PredictiveNodeJAX(C, H, W, materialize_copy=True)
    node_copy.training = True
    out_kernel = node_copy(x)
    out_kernel = jax.block_until_ready(out_kernel)
    assert out_kernel.shape == x.shape
    assert out_kernel.dtype == x.dtype
    assert bool(jnp.all(out_kernel == x))
    assert node_copy.value.shape == x.shape

    # 2) Default (fast) node: training path aliases the input — zero traffic.
    node = PredictiveNodeJAX(C, H, W)
    node.training = True
    out_train = jax.block_until_ready(node(x))
    assert out_train.shape == x.shape
    assert bool(jnp.all(out_train == x))
    assert node.value.shape == x.shape

    # 3) Eval mode: identity.
    node.training = False
    out_eval = jax.block_until_ready(node(x))
    assert bool(jnp.all(out_eval == x))

    # reset() empties the state, as in the torch module.
    node.reset()
    assert node.value.size == 0

    print("KERNEL_OK")
</pallas_src>

<mosaic_0001>
module attributes {stable_mosaic.version = 11 : i64} {
  func.func @_dma_copy_kernel(%arg0: memref<2x4x16x16xf32, #tpu.memory_space<any>>, %arg1: memref<2x4x16x16xf32, #tpu.memory_space<any>>, %arg2: memref<!tpu.dma_semaphore, #tpu.memory_space<semaphore_mem>>) attributes {dimension_semantics = [], scalar_prefetch = 0 : i64, scratch_operands = 1 : i64, tpu.core_type = #tpu.core_type<tc>} {
    tpu.enqueue_dma source(%arg0 : memref<2x4x16x16xf32, #tpu.memory_space<any>>) target(%arg1 : memref<2x4x16x16xf32, #tpu.memory_space<any>>) target_semaphore(%arg2 : memref<!tpu.dma_semaphore, #tpu.memory_space<semaphore_mem>>)
    tpu.wait_dma2 semaphore(%arg2 : memref<!tpu.dma_semaphore, #tpu.memory_space<semaphore_mem>>) src(%arg0 : memref<2x4x16x16xf32, #tpu.memory_space<any>>) dst(%arg1 : memref<2x4x16x16xf32, #tpu.memory_space<any>>)
    return
  }
}

</mosaic_0001>

<llo_original>
// kernel: tpu_custom_call.1
$region0: #{tpu_custom_call.1}
  #allocation0 [shape = 'u32[]', space=smem, size = 0x4, offset = 0x4, fixed_abs, tag = 'smem constant byte address 0x4 - core index']
  #allocation1 [shape = 'u32[72,128]{1,0:T(1,128)}', space=vmem, size = 0x9000, scoped, tag = 'internal scratch']
  #allocation2 [shape = 's32[1]{0}', space=sflag, size = 0x4, scoped, tag = 'scratch operand']
  #allocation3 [shape = 's32[]', space=sflag, size = 0x4, offset = 0, fixed_abs, tag = 'sflag constant byte address 0x0 - dummy sync flag']
  #allocation4 [shape = 'u32[0]{0}', space=smem, size = 0, offset = 0, fixed_abs, tag = 'smem constant byte address 0x0 - null']
  %s0 = inlined_call_operand.hbm [shape: f32[2,4,16,16], index: 0, kind: input, shape index: {}]
  %s1 = inlined_call_operand.hbm [shape: f32[2,4,16,16], index: 1, kind: output, shape index: {}]
  %s2 = sld [smem:[#allocation0]]
  $region2: #{tpu_custom_call.1} parent=0
    _
  %s4 = ssub.s32 1, %s2
  %s5 = scalar_select 0, %s4, %s2
  %s7 = sshll.u32 1, 14
  %s8 = sxor.u32 4294967295, %s7
  %s10 = sshll.u32 %s0, 4
  %s11 = int_to_ptr.hbm [resolvable:$true] %s10
  %s12 = sshll.u32 %s1, 4
  %s13 = int_to_ptr.hbm [resolvable:$true] %s12
  %16 = dma.general %s11, 2048, %s13, [#allocation2], [#allocation3], [#allocation4], 0, 0
  %s17 = smul.u32 2, 4
  %s18 = smul.u32 %s17, 16
  %s19 = smul.u32 %s18, 1
  %s20 = sshll.u32 %s19, 4
  %21 = dma.done [#allocation2], %s20
  %22 = vsyncmov [#allocation2]
  %s23 = vpop.sfrf %22
  %p24 = scmp.eq.s32.totalorder %s23, 0
  %p25 = pneg %p24
  %27 = shalt.err (%p25)

</llo_original>
